<compile_context>
chip_gen: v7x
topology: tpu7x:2x2x1
jax: 0.10.0
libtpu: 0.0.40
codegen_flags: <defaults>
</compile_context>

<pallas_src>
import numpy as np
import jax
import jax.numpy as jnp
from jax.experimental import pallas as pl
from jax.experimental.pallas import tpu as pltpu

KH = KW = 3
PAD = 1
BN_EPS = 1e-5


def _make_kernel(C, W, TH):
    HWt = TH * W  # flat size of one output row tile (lane dim)

    def kernel(xc_ref, halo_ref, w_ref, shift_ref, mask_ref, o_ref, buf_ref):
        # xc_ref:    (C, TH*W)      current row tile (flattened rows)
        # halo_ref:  (2, C, W)      [row above, row below] (zeros at image edge)
        # w_ref:     (9, C, C)      per-tap direct-conv weight, BN scale folded in
        # shift_ref: (C, 1)         folded BatchNorm shift (+ conv bias)
        # mask_ref:  (2, TH*W)      column validity masks for kw = 0 / kw = 2
        # o_ref:     (C, TH*W)
        # buf_ref:   (C, (TH+2)*W + 2)  padded local window (VMEM scratch)
        #
        # Assemble the padded window.  NO full-buffer memset: every interior
        # lane is overwritten below; the two guard lanes (col 0 and the last
        # col) are only ever read under a jnp.where mask, so stale VMEM is
        # harmless.
        buf_ref[:, 1:W + 1] = halo_ref[0]                        # row above the tile
        buf_ref[:, W + 1:W + 1 + HWt] = xc_ref[...]              # the TH tile rows
        buf_ref[:, W + 1 + HWt:2 * W + 1 + HWt] = halo_ref[1]    # row below the tile

        not_left = mask_ref[0:1, :] != 0.0     # (1, TH*W): output col != 0
        not_right = mask_ref[1:2, :] != 0.0    # (1, TH*W): output col != W-1

        # Per-tap channel-mix accumulation (no materialized im2col slab).
        acc = jnp.zeros((C, HWt), jnp.float32)
        for kh in range(KH):
            for kw in range(KW):
                k = kh * KW + kw
                off = kh * W + kw                 # static lane offset of tap (kh, kw)
                tap = buf_ref[:, off:off + HWt]
                if kw == 0:                        # source column fell off the left edge
                    tap = jnp.where(not_left, tap, 0.0)
                elif kw == 2:                      # source column fell off the right edge
                    tap = jnp.where(not_right, tap, 0.0)
                acc = acc + jnp.dot(w_ref[k], tap,
                                    preferred_element_type=jnp.float32)

        # Folded BN shift + ReLU, lane-dense store.
        o_ref[...] = jnp.maximum(acc + shift_ref[...], 0.0).astype(o_ref.dtype)

    return kernel


def _choose_row_tile(H, W, row_tile):
    def ok(th):
        return H % th == 0 and (th == H or (th * W) % 128 == 0)

    if row_tile is not None and 0 < row_tile <= H and ok(row_tile):
        return row_tile
    # Prefer the largest proper tile (lane-dense AND >= 2 grid steps so both
    # v7x TensorCores get work); fall back to the whole image only if no
    # 128-lane-aligned divisor exists.
    for th in range(H // 2, 0, -1):
        if ok(th):
            return th
    return H


def _vmem_limit_bytes(C, HWt, BUF, W):
    # double-buffered in/out tiles + padded-window scratch + resident constants,
    # with headroom; capped at 48 MiB so the kernel fits v7x's 64 MiB per-TC VMEM.
    step = 4 * (4 * C * HWt + C * BUF + KH * KW * C * C + C + 2 * HWt + 4 * C * W)
    return int(min(max(2 * step, 32 * 1024 * 1024), 48 * 1024 * 1024))


def deconv_block_forward(x_nchw, w_t, conv_bias, gamma, beta,
                         running_mean, running_var, eps=BN_EPS, row_tile=None):
    """ConvTranspose2d(C->C,3,1,1) + BatchNorm2d(eval) + ReLU, NCHW in/out.

    x_nchw:    (N, C, H, W)
    w_t:       (C_in, C_out, 3, 3)   ConvTranspose2d weight (PyTorch layout)
    conv_bias, gamma, beta, running_mean, running_var: (C,)
    """
    N, C, H, W = x_nchw.shape

    TH = _choose_row_tile(H, W, row_tile)
    T = H // TH
    HW, HWt = H * W, TH * W
    BUF = (TH + 2) * W + 2

    # Guard: don't silently blow VMEM when falling back to TH = H.
    est = 4 * (4 * C * HWt + C * BUF)
    if est > 48 * 1024 * 1024:
        raise ValueError(
            f"row tile TH={TH} needs ~{est >> 20} MiB VMEM; pass a smaller row_tile")

    x = x_nchw.astype(jnp.float32)
    x_flat = x.reshape(N, C, HW)          # free reshape, no transpose / pad pass

    # ---- halo side-band: one row above / below each tile (zeros at the image
    #      edge).  Replaces re-reading whole neighbour tiles: input HBM traffic
    #      per tile drops from 3*TH rows to (TH + 2) rows.
    xp = jnp.pad(x, ((0, 0), (0, 0), (1, 1), (0, 0)))            # (N, C, H+2, W)
    top_rows = np.arange(T) * TH                                 # padded idx of row (t*TH - 1)
    bot_rows = np.arange(T) * TH + TH + 1                        # padded idx of row ((t+1)*TH)
    top = jnp.transpose(xp[:, :, top_rows, :], (0, 2, 1, 3))     # (N, T, C, W)
    bot = jnp.transpose(xp[:, :, bot_rows, :], (0, 2, 1, 3))     # (N, T, C, W)
    halo = jnp.stack([top, bot], axis=2).reshape(N * T, 2, C, W)

    # ---- ConvTranspose(stride=1, pad=1) == direct conv with flipped kernel and
    #      swapped in/out channels.  Per-tap weights (9, C_out, C_in), with the
    #      BatchNorm (inference) scale folded in at trace time.
    inv_std = 1.0 / jnp.sqrt(running_var.astype(jnp.float32) + eps)
    scale = gamma.astype(jnp.float32) * inv_std                               # (C,)
    shift = (beta.astype(jnp.float32)
             + (conv_bias.astype(jnp.float32) - running_mean.astype(jnp.float32)) * scale)
    w_dir = jnp.transpose(w_t[:, :, ::-1, ::-1].astype(jnp.float32),
                          (2, 3, 1, 0))                                       # (kh, kw, co, ci)
    w_tap = w_dir.reshape(KH * KW, C, C) * scale.reshape(1, C, 1)             # BN scale folded
    shift = shift.reshape(C, 1)

    # ---- column-edge validity masks for the kw = 0 / kw = 2 taps.
    col = np.arange(HWt) % W
    mask = np.ones((2, HWt), np.float32)
    mask[0, col == 0] = 0.0
    mask[1, col == W - 1] = 0.0
    mask = jnp.asarray(mask)

    kernel = _make_kernel(C, W, TH)

    out_flat = pl.pallas_call(
        kernel,
        out_shape=jax.ShapeDtypeStruct((N, C, HW), jnp.float32),
        grid_spec=pltpu.PrefetchScalarGridSpec(
            num_scalar_prefetch=0,
            grid=(N, T),
            in_specs=[
                pl.BlockSpec((None, C, HWt), lambda n, t: (n, 0, t)),
                pl.BlockSpec((None, 2, C, W), lambda n, t: (n * T + t, 0, 0, 0)),
                pl.BlockSpec((KH * KW, C, C), lambda n, t: (0, 0, 0)),
                pl.BlockSpec((C, 1), lambda n, t: (0, 0)),
                pl.BlockSpec((2, HWt), lambda n, t: (0, 0)),
            ],
            out_specs=pl.BlockSpec((None, C, HWt), lambda n, t: (n, 0, t)),
            scratch_shapes=[pltpu.VMEM((C, BUF), jnp.float32)],
        ),
        compiler_params=pltpu.CompilerParams(
            dimension_semantics=("parallel", "parallel"),
            vmem_limit_bytes=_vmem_limit_bytes(C, HWt, BUF, W),
        ),
    )(x_flat, halo, w_tap, shift, mask)

    return out_flat.reshape(N, C, H, W)


def reference_forward(x, w_t, conv_bias, gamma, beta, mean, var, eps=BN_EPS):
    """Direct NumPy implementation of PyTorch ConvTranspose2d + BN(eval) + ReLU."""
    N, C, H, W = x.shape
    out = np.zeros((N, C, H, W), np.float32)
    for n in range(N):
        for co in range(C):
            for a in range(H):
                for b in range(W):
                    s = 0.0
                    for ci in range(C):
                        for kh in range(KH):
                            for kw in range(KW):
                                ia = a - kh + PAD
                                ib = b - kw + PAD
                                if 0 <= ia < H and 0 <= ib < W:
                                    s += x[n, ci, ia, ib] * w_t[ci, co, kh, kw]
                    out[n, co, a, b] = s + conv_bias[co]
    out = ((out - mean[None, :, None, None])
           / np.sqrt(var[None, :, None, None] + eps)
           * gamma[None, :, None, None] + beta[None, :, None, None])
    return np.maximum(out, 0.0)


if __name__ == "__main__":
    # Deconv_block(out=4) on (2, 4, 16, 16); BatchNorm features == conv channels.
    N, C, H, W = 2, 4, 16, 16

    key = jax.random.PRNGKey(0)
    k_x, k_w, k_b, k_g, k_be, k_m, k_v = jax.random.split(key, 7)

    x = jax.random.normal(k_x, (N, C, H, W), jnp.float32)
    w_t = 0.1 * jax.random.normal(k_w, (C, C, KH, KW), jnp.float32)   # (Cin, Cout, kh, kw)
    conv_bias = 0.05 * jax.random.normal(k_b, (C,), jnp.float32)
    gamma = 1.0 + 0.1 * jax.random.normal(k_g, (C,), jnp.float32)
    beta = 0.1 * jax.random.normal(k_be, (C,), jnp.float32)
    running_mean = 0.1 * jax.random.normal(k_m, (C,), jnp.float32)
    running_var = 1.0 + 0.1 * jax.nn.softplus(jax.random.normal(k_v, (C,), jnp.float32))

    out = deconv_block_forward(x, w_t, conv_bias, gamma, beta,
                               running_mean, running_var, row_tile=8)
    out = jax.block_until_ready(out)

    ref = reference_forward(np.asarray(x), np.asarray(w_t), np.asarray(conv_bias),
                            np.asarray(gamma), np.asarray(beta),
                            np.asarray(running_mean), np.asarray(running_var))
    np.testing.assert_allclose(np.asarray(out), ref, rtol=1e-4, atol=1e-4)

    print("KERNEL_OK")
</pallas_src>

<mosaic_0001>
module attributes {stable_mosaic.version = 11 : i64} {
  func.func @kernel(%arg0: i32, %arg1: i32, %arg2: memref<1x4x128xf32, #tpu.memory_space<vmem>>, %arg3: memref<1x2x4x16xf32, #tpu.memory_space<vmem>>, %arg4: memref<9x4x4xf32, #tpu.memory_space<vmem>>, %arg5: memref<4x1xf32, #tpu.memory_space<vmem>>, %arg6: memref<2x128xf32, #tpu.memory_space<vmem>>, %arg7: memref<1x4x128xf32, #tpu.memory_space<vmem>>, %arg8: memref<4x162xf32, #tpu.memory_space<vmem>>) attributes {dimension_semantics = [#tpu.dimension_semantics<parallel>, #tpu.dimension_semantics<parallel>], iteration_bounds = array<i64: 2, 2>, scalar_prefetch = 0 : i64, scratch_operands = 1 : i64, tpu.core_type = #tpu.core_type<tc>, window_params = [{transform_indices = @transform_0, window_bounds = array<i64: 1, 4, 128>}, {transform_indices = @transform_1, window_bounds = array<i64: 1, 2, 4, 16>}, {pipeline_mode = #tpu.pipeline_mode<synchronous>, transform_indices = @transform_2, window_bounds = array<i64: 9, 4, 4>}, {pipeline_mode = #tpu.pipeline_mode<synchronous>, transform_indices = @transform_3, window_bounds = array<i64: 4, 1>}, {pipeline_mode = #tpu.pipeline_mode<synchronous>, transform_indices = @transform_4, window_bounds = array<i64: 2, 128>}, {transform_indices = @transform_5, window_bounds = array<i64: 1, 4, 128>}]} {
    %c0 = arith.constant 0 : index
    %c0_0 = arith.constant 0 : index
    %c0_1 = arith.constant 0 : index
    %c0_2 = arith.constant 0 : index
    %0 = vector.load %arg3[%c0, %c0_0, %c0_1, %c0_2] : memref<1x2x4x16xf32, #tpu.memory_space<vmem>>, vector<1x1x4x16xf32>
    %1 = vector.shape_cast %0 : vector<1x1x4x16xf32> to vector<4x16xf32>
    %c0_3 = arith.constant 0 : index
    %c1 = arith.constant 1 : index
    %2 = vector.load %arg8[%c0_3, %c1] : memref<4x162xf32, #tpu.memory_space<vmem>>, vector<4x16xf32>
    tpu.vector_store %arg8[%c0_3, %c1], %1 {strides = array<i32>} : memref<4x162xf32, #tpu.memory_space<vmem>>, vector<4x16xf32>,
    %c0_4 = arith.constant 0 : index
    %c0_5 = arith.constant 0 : index
    %c0_6 = arith.constant 0 : index
    %3 = vector.load %arg2[%c0_4, %c0_5, %c0_6] : memref<1x4x128xf32, #tpu.memory_space<vmem>>, vector<1x4x128xf32>
    %4 = vector.shape_cast %3 : vector<1x4x128xf32> to vector<4x128xf32>
    %c0_7 = arith.constant 0 : index
    %c17 = arith.constant 17 : index
    %5 = vector.load %arg8[%c0_7, %c17] : memref<4x162xf32, #tpu.memory_space<vmem>>, vector<4x128xf32>
    tpu.vector_store %arg8[%c0_7, %c17], %4 {strides = array<i32>} : memref<4x162xf32, #tpu.memory_space<vmem>>, vector<4x128xf32>,
    %c0_8 = arith.constant 0 : index
    %c1_9 = arith.constant 1 : index
    %c0_10 = arith.constant 0 : index
    %c0_11 = arith.constant 0 : index
    %6 = vector.load %arg3[%c0_8, %c1_9, %c0_10, %c0_11] : memref<1x2x4x16xf32, #tpu.memory_space<vmem>>, vector<1x1x4x16xf32>
    %7 = vector.shape_cast %6 : vector<1x1x4x16xf32> to vector<4x16xf32>
    %c0_12 = arith.constant 0 : index
    %c145 = arith.constant 145 : index
    %8 = vector.load %arg8[%c0_12, %c145] : memref<4x162xf32, #tpu.memory_space<vmem>>, vector<4x16xf32>
    tpu.vector_store %arg8[%c0_12, %c145], %7 {strides = array<i32>} : memref<4x162xf32, #tpu.memory_space<vmem>>, vector<4x16xf32>,
    %c0_13 = arith.constant 0 : index
    %c0_14 = arith.constant 0 : index
    %9 = vector.load %arg6[%c0_13, %c0_14] : memref<2x128xf32, #tpu.memory_space<vmem>>, vector<1x128xf32>
    %cst = arith.constant 0.000000e+00 : f32
    %10 = vector.broadcast %cst : f32 to vector<1x128xf32>
    %11 = arith.cmpf one, %9, %10 : vector<1x128xf32>
    %c1_15 = arith.constant 1 : index
    %c0_16 = arith.constant 0 : index
    %12 = vector.load %arg6[%c1_15, %c0_16] : memref<2x128xf32, #tpu.memory_space<vmem>>, vector<1x128xf32>
    %cst_17 = arith.constant 0.000000e+00 : f32
    %13 = vector.broadcast %cst_17 : f32 to vector<1x128xf32>
    %14 = arith.cmpf one, %12, %13 : vector<1x128xf32>
    %cst_18 = arith.constant 0.000000e+00 : f32
    %15 = vector.broadcast %cst_18 : f32 to vector<4x128xf32>
    %c0_19 = arith.constant 0 : index
    %c0_20 = arith.constant 0 : index
    %16 = vector.load %arg8[%c0_19, %c0_20] : memref<4x162xf32, #tpu.memory_space<vmem>>, vector<4x128xf32>
    %cst_21 = arith.constant 0.000000e+00 : f32
    %17 = vector.shape_cast %11 : vector<1x128xi1> to vector<1x128xi1>
    %18 = vector.broadcast %17 : vector<1x128xi1> to vector<4x128xi1>
    %19 = vector.broadcast %cst_21 : f32 to vector<4x128xf32>
    %20 = arith.select %18, %16, %19 : vector<4x128xi1>, vector<4x128xf32>
    %c0_22 = arith.constant 0 : index
    %c0_23 = arith.constant 0 : index
    %c0_24 = arith.constant 0 : index
    %21 = vector.load %arg4[%c0_22, %c0_23, %c0_24] : memref<9x4x4xf32, #tpu.memory_space<vmem>>, vector<1x4x4xf32>
    %22 = vector.shape_cast %21 : vector<1x4x4xf32> to vector<4x4xf32>
    %cst_25 = arith.constant dense<0.000000e+00> : vector<4x128xf32>
    %23 = tpu.matmul %22, %20, %cst_25 {dimension_numbers = #tpu.dot_dimension_numbers<[1], [0], [0], [1], [0, 0, 1, 1], [], []>} : vector<4x4xf32>, vector<4x128xf32>, vector<4x128xf32> -> vector<4x128xf32>
    %24 = arith.addf %15, %23 : vector<4x128xf32>
    %c0_26 = arith.constant 0 : index
    %c1_27 = arith.constant 1 : index
    %25 = vector.load %arg8[%c0_26, %c1_27] : memref<4x162xf32, #tpu.memory_space<vmem>>, vector<4x128xf32>
    %c1_28 = arith.constant 1 : index
    %c0_29 = arith.constant 0 : index
    %c0_30 = arith.constant 0 : index
    %26 = vector.load %arg4[%c1_28, %c0_29, %c0_30] : memref<9x4x4xf32, #tpu.memory_space<vmem>>, vector<1x4x4xf32>
    %27 = vector.shape_cast %26 : vector<1x4x4xf32> to vector<4x4xf32>
    %cst_31 = arith.constant dense<0.000000e+00> : vector<4x128xf32>
    %28 = tpu.matmul %27, %25, %cst_31 {dimension_numbers = #tpu.dot_dimension_numbers<[1], [0], [0], [1], [0, 0, 1, 1], [], []>} : vector<4x4xf32>, vector<4x128xf32>, vector<4x128xf32> -> vector<4x128xf32>
    %29 = arith.addf %24, %28 : vector<4x128xf32>
    %c0_32 = arith.constant 0 : index
    %c2 = arith.constant 2 : index
    %30 = vector.load %arg8[%c0_32, %c2] : memref<4x162xf32, #tpu.memory_space<vmem>>, vector<4x128xf32>
    %cst_33 = arith.constant 0.000000e+00 : f32
    %31 = vector.shape_cast %14 : vector<1x128xi1> to vector<1x128xi1>
    %32 = vector.broadcast %31 : vector<1x128xi1> to vector<4x128xi1>
    %33 = vector.broadcast %cst_33 : f32 to vector<4x128xf32>
    %34 = arith.select %32, %30, %33 : vector<4x128xi1>, vector<4x128xf32>
    %c2_34 = arith.constant 2 : index
    %c0_35 = arith.constant 0 : index
    %c0_36 = arith.constant 0 : index
    %35 = vector.load %arg4[%c2_34, %c0_35, %c0_36] : memref<9x4x4xf32, #tpu.memory_space<vmem>>, vector<1x4x4xf32>
    %36 = vector.shape_cast %35 : vector<1x4x4xf32> to vector<4x4xf32>
    %cst_37 = arith.constant dense<0.000000e+00> : vector<4x128xf32>
    %37 = tpu.matmul %36, %34, %cst_37 {dimension_numbers = #tpu.dot_dimension_numbers<[1], [0], [0], [1], [0, 0, 1, 1], [], []>} : vector<4x4xf32>, vector<4x128xf32>, vector<4x128xf32> -> vector<4x128xf32>
    %38 = arith.addf %29, %37 : vector<4x128xf32>
    %c0_38 = arith.constant 0 : index
    %c16 = arith.constant 16 : index
    %39 = vector.load %arg8[%c0_38, %c16] : memref<4x162xf32, #tpu.memory_space<vmem>>, vector<4x128xf32>
    %cst_39 = arith.constant 0.000000e+00 : f32
    %40 = vector.shape_cast %11 : vector<1x128xi1> to vector<1x128xi1>
    %41 = vector.broadcast %40 : vector<1x128xi1> to vector<4x128xi1>
    %42 = vector.broadcast %cst_39 : f32 to vector<4x128xf32>
    %43 = arith.select %41, %39, %42 : vector<4x128xi1>, vector<4x128xf32>
    %c3 = arith.constant 3 : index
    %c0_40 = arith.constant 0 : index
    %c0_41 = arith.constant 0 : index
    %44 = vector.load %arg4[%c3, %c0_40, %c0_41] : memref<9x4x4xf32, #tpu.memory_space<vmem>>, vector<1x4x4xf32>
    %45 = vector.shape_cast %44 : vector<1x4x4xf32> to vector<4x4xf32>
    %cst_42 = arith.constant dense<0.000000e+00> : vector<4x128xf32>
    %46 = tpu.matmul %45, %43, %cst_42 {dimension_numbers = #tpu.dot_dimension_numbers<[1], [0], [0], [1], [0, 0, 1, 1], [], []>} : vector<4x4xf32>, vector<4x128xf32>, vector<4x128xf32> -> vector<4x128xf32>
    %47 = arith.addf %38, %46 : vector<4x128xf32>
    %c0_43 = arith.constant 0 : index
    %c17_44 = arith.constant 17 : index
    %48 = vector.load %arg8[%c0_43, %c17_44] : memref<4x162xf32, #tpu.memory_space<vmem>>, vector<4x128xf32>
    %c4 = arith.constant 4 : index
    %c0_45 = arith.constant 0 : index
    %c0_46 = arith.constant 0 : index
    %49 = vector.load %arg4[%c4, %c0_45, %c0_46] : memref<9x4x4xf32, #tpu.memory_space<vmem>>, vector<1x4x4xf32>
    %50 = vector.shape_cast %49 : vector<1x4x4xf32> to vector<4x4xf32>
    %cst_47 = arith.constant dense<0.000000e+00> : vector<4x128xf32>
    %51 = tpu.matmul %50, %48, %cst_47 {dimension_numbers = #tpu.dot_dimension_numbers<[1], [0], [0], [1], [0, 0, 1, 1], [], []>} : vector<4x4xf32>, vector<4x128xf32>, vector<4x128xf32> -> vector<4x128xf32>
    %52 = arith.addf %47, %51 : vector<4x128xf32>
    %c0_48 = arith.constant 0 : index
    %c18 = arith.constant 18 : index
    %53 = vector.load %arg8[%c0_48, %c18] : memref<4x162xf32, #tpu.memory_space<vmem>>, vector<4x128xf32>
    %cst_49 = arith.constant 0.000000e+00 : f32
    %54 = vector.shape_cast %14 : vector<1x128xi1> to vector<1x128xi1>
    %55 = vector.broadcast %54 : vector<1x128xi1> to vector<4x128xi1>
    %56 = vector.broadcast %cst_49 : f32 to vector<4x128xf32>
    %57 = arith.select %55, %53, %56 : vector<4x128xi1>, vector<4x128xf32>
    %c5 = arith.constant 5 : index
    %c0_50 = arith.constant 0 : index
    %c0_51 = arith.constant 0 : index
    %58 = vector.load %arg4[%c5, %c0_50, %c0_51] : memref<9x4x4xf32, #tpu.memory_space<vmem>>, vector<1x4x4xf32>
    %59 = vector.shape_cast %58 : vector<1x4x4xf32> to vector<4x4xf32>
    %cst_52 = arith.constant dense<0.000000e+00> : vector<4x128xf32>
    %60 = tpu.matmul %59, %57, %cst_52 {dimension_numbers = #tpu.dot_dimension_numbers<[1], [0], [0], [1], [0, 0, 1, 1], [], []>} : vector<4x4xf32>, vector<4x128xf32>, vector<4x128xf32> -> vector<4x128xf32>
    %61 = arith.addf %52, %60 : vector<4x128xf32>
    %c0_53 = arith.constant 0 : index
    %c32 = arith.constant 32 : index
    %62 = vector.load %arg8[%c0_53, %c32] : memref<4x162xf32, #tpu.memory_space<vmem>>, vector<4x128xf32>
    %cst_54 = arith.constant 0.000000e+00 : f32
    %63 = vector.shape_cast %11 : vector<1x128xi1> to vector<1x128xi1>
    %64 = vector.broadcast %63 : vector<1x128xi1> to vector<4x128xi1>
    %65 = vector.broadcast %cst_54 : f32 to vector<4x128xf32>
    %66 = arith.select %64, %62, %65 : vector<4x128xi1>, vector<4x128xf32>
    %c6 = arith.constant 6 : index
    %c0_55 = arith.constant 0 : index
    %c0_56 = arith.constant 0 : index
    %67 = vector.load %arg4[%c6, %c0_55, %c0_56] : memref<9x4x4xf32, #tpu.memory_space<vmem>>, vector<1x4x4xf32>
    %68 = vector.shape_cast %67 : vector<1x4x4xf32> to vector<4x4xf32>
    %cst_57 = arith.constant dense<0.000000e+00> : vector<4x128xf32>
    %69 = tpu.matmul %68, %66, %cst_57 {dimension_numbers = #tpu.dot_dimension_numbers<[1], [0], [0], [1], [0, 0, 1, 1], [], []>} : vector<4x4xf32>, vector<4x128xf32>, vector<4x128xf32> -> vector<4x128xf32>
    %70 = arith.addf %61, %69 : vector<4x128xf32>
    %c0_58 = arith.constant 0 : index
    %c33 = arith.constant 33 : index
    %71 = vector.load %arg8[%c0_58, %c33] : memref<4x162xf32, #tpu.memory_space<vmem>>, vector<4x128xf32>
    %c7 = arith.constant 7 : index
    %c0_59 = arith.constant 0 : index
    %c0_60 = arith.constant 0 : index
    %72 = vector.load %arg4[%c7, %c0_59, %c0_60] : memref<9x4x4xf32, #tpu.memory_space<vmem>>, vector<1x4x4xf32>
    %73 = vector.shape_cast %72 : vector<1x4x4xf32> to vector<4x4xf32>
    %cst_61 = arith.constant dense<0.000000e+00> : vector<4x128xf32>
    %74 = tpu.matmul %73, %71, %cst_61 {dimension_numbers = #tpu.dot_dimension_numbers<[1], [0], [0], [1], [0, 0, 1, 1], [], []>} : vector<4x4xf32>, vector<4x128xf32>, vector<4x128xf32> -> vector<4x128xf32>
    %75 = arith.addf %70, %74 : vector<4x128xf32>
    %c0_62 = arith.constant 0 : index
    %c34 = arith.constant 34 : index
    %76 = vector.load %arg8[%c0_62, %c34] : memref<4x162xf32, #tpu.memory_space<vmem>>, vector<4x128xf32>
    %cst_63 = arith.constant 0.000000e+00 : f32
    %77 = vector.shape_cast %14 : vector<1x128xi1> to vector<1x128xi1>
    %78 = vector.broadcast %77 : vector<1x128xi1> to vector<4x128xi1>
    %79 = vector.broadcast %cst_63 : f32 to vector<4x128xf32>
    %80 = arith.select %78, %76, %79 : vector<4x128xi1>, vector<4x128xf32>
    %c8 = arith.constant 8 : index
    %c0_64 = arith.constant 0 : index
    %c0_65 = arith.constant 0 : index
    %81 = vector.load %arg4[%c8, %c0_64, %c0_65] : memref<9x4x4xf32, #tpu.memory_space<vmem>>, vector<1x4x4xf32>
    %82 = vector.shape_cast %81 : vector<1x4x4xf32> to vector<4x4xf32>
    %cst_66 = arith.constant dense<0.000000e+00> : vector<4x128xf32>
    %83 = tpu.matmul %82, %80, %cst_66 {dimension_numbers = #tpu.dot_dimension_numbers<[1], [0], [0], [1], [0, 0, 1, 1], [], []>} : vector<4x4xf32>, vector<4x128xf32>, vector<4x128xf32> -> vector<4x128xf32>
    %84 = arith.addf %75, %83 : vector<4x128xf32>
    %c0_67 = arith.constant 0 : index
    %c0_68 = arith.constant 0 : index
    %85 = vector.load %arg5[%c0_67, %c0_68] : memref<4x1xf32, #tpu.memory_space<vmem>>, vector<4x1xf32>
    %86 = vector.broadcast %85 : vector<4x1xf32> to vector<4x128xf32>
    %87 = arith.addf %84, %86 : vector<4x128xf32>
    %cst_69 = arith.constant 0.000000e+00 : f32
    %88 = vector.broadcast %cst_69 : f32 to vector<4x128xf32>
    %89 = arith.maximumf %87, %88 : vector<4x128xf32>
    %c0_70 = arith.constant 0 : index
    %c0_71 = arith.constant 0 : index
    %c0_72 = arith.constant 0 : index
    %90 = vector.load %arg7[%c0_70, %c0_71, %c0_72] : memref<1x4x128xf32, #tpu.memory_space<vmem>>, vector<1x4x128xf32>
    %91 = vector.shape_cast %90 : vector<1x4x128xf32> to vector<4x128xf32>
    %92 = vector.shape_cast %89 : vector<4x128xf32> to vector<1x4x128xf32>
    tpu.vector_store %arg7[%c0_70, %c0_71, %c0_72], %92 {strides = array<i32>} : memref<1x4x128xf32, #tpu.memory_space<vmem>>, vector<1x4x128xf32>,
    return
  }
  func.func @transform_0(%arg0: i32, %arg1: i32) -> (i32, i32, i32) {
    %c0_i32 = arith.constant 0 : i32
    %c0_i32_0 = arith.constant 0 : i32
    return %arg0, %c0_i32, %arg1 : i32, i32, i32
  }
  func.func @transform_1(%arg0: i32, %arg1: i32) -> (i32, i32, i32, i32) {
    %c2_i32 = arith.constant 2 : i32
    %0 = arith.muli %arg0, %c2_i32 : i32
    %1 = arith.addi %0, %arg1 : i32
    %c0_i32 = arith.constant 0 : i32
    %c0_i32_0 = arith.constant 0 : i32
    %c0_i32_1 = arith.constant 0 : i32
    %c0_i32_2 = arith.constant 0 : i32
    return %1, %c0_i32, %c0_i32_0, %c0_i32_1 : i32, i32, i32, i32
  }
  func.func @transform_2(%arg0: i32, %arg1: i32) -> (i32, i32, i32) {
    %c0_i32 = arith.constant 0 : i32
    %c0_i32_0 = arith.constant 0 : i32
    %c0_i32_1 = arith.constant 0 : i32
    %c0_i32_2 = arith.constant 0 : i32
    return %c0_i32, %c0_i32_0, %c0_i32_1 : i32, i32, i32
  }
  func.func @transform_3(%arg0: i32, %arg1: i32) -> (i32, i32) {
    %c0_i32 = arith.constant 0 : i32
    %c0_i32_0 = arith.constant 0 : i32
    %c0_i32_1 = arith.constant 0 : i32
    return %c0_i32, %c0_i32_0 : i32, i32
  }
  func.func @transform_4(%arg0: i32, %arg1: i32) -> (i32, i32) {
    %c0_i32 = arith.constant 0 : i32
    %c0_i32_0 = arith.constant 0 : i32
    %c0_i32_1 = arith.constant 0 : i32
    return %c0_i32, %c0_i32_0 : i32, i32
  }
  func.func @transform_5(%arg0: i32, %arg1: i32) -> (i32, i32, i32) {
    %c0_i32 = arith.constant 0 : i32
    %c0_i32_0 = arith.constant 0 : i32
    return %arg0, %c0_i32, %arg1 : i32, i32, i32
  }
}

</mosaic_0001>

<llo_original>
// kernel: tpu_custom_call.1
$region0: #{tpu_custom_call.1}
  #allocation0 [shape = 'u32[]', space=smem, size = 0x4, offset = 0x4, fixed_abs, tag = 'smem constant byte address 0x4 - core index']
  #allocation1 [shape = 'u32[144,128]{1,0:T(1,128)}', space=vmem, size = 0x12000, scoped, tag = 'internal scratch']
  #allocation2 [shape = 'f32[4,162]{1,0:T(4,128)}', space=vmem, size = 0x1000, scoped, tag = 'scratch operand']
  %s0 = inlined_call_operand.vmem [shape: f32[2,4,256], index: 0, kind: input, shape index: {}]
  %s1 = inlined_call_operand.vmem [shape: f32[4,2,4,16], index: 1, kind: input, shape index: {}]
  %s2 = inlined_call_operand.vmem [shape: f32[9,4,4], index: 2, kind: input, shape index: {}]
  %s3 = inlined_call_operand.vmem [shape: f32[4,1], index: 3, kind: input, shape index: {}]
  %s4 = inlined_call_operand.vmem [shape: f32[2,128], index: 4, kind: input, shape index: {}]
  %s5 = inlined_call_operand.hbm [shape: f32[2,4,256], index: 5, kind: output, shape index: {}]
  %s6 = sld [smem:[#allocation0]]
  $region53: #{tpu_custom_call.1} parent=0
    _
  %s8 = ssub.s32 1, %s6
  %s9 = scalar_select 0, %s8, %s6
  $region1: #{tpu_custom_call.1} parent=0
    #allocation3 [shape = 'u8[4096]{0}', space=vmem, size = 0x1000, scoped, tag = 'output window, operand 0']
    #allocation4 [shape = 's32[2]{0}', space=sflag, size = 0x8, scoped, tag = 'scoped memory for tpu_custom_call.1']
    %10 = vsyncpa [#allocation4], 0
    %s11 = scalar_lea.sflag [#allocation4], 1
    %12 = vsyncpa %s11, 0
    loop: start=0, step=1, limit=6
    $region2: #{tpu_custom_call.1} parent=1 // loop_pre_header
      _
    $region3: #{tpu_custom_call.1} parent=1 // loop_header
      %s14 = sphi 0, %s18
      %p15 = scmp.ge.s32.totalorder %s14, 6
      %s21 = sphi 0, %s33
      %s22 = sphi 0, %s29
      %s23 = sphi 0, %s21
      %s24 = sphi 0, %s22
      %s25 = sphi 0, %s23
      %s26 = sphi 0, %s24
      %s38 = sphi 0, %s40
      %s41 = sphi 0, %s38
      %s42 = sphi 0, %s41
      %s58 = sphi 0, %s42
      %s68 = sphi 0, %s70
      %s71 = sphi 0, %s68
      %s72 = sphi 0, %s71
      %s88 = sphi 0, %s72
      %s92 = sphi 0, %s92
      %s94 = sphi 0, %s92
      %s95 = sphi 0, %s94
      %s109 = sphi 0, %s95
      %s113 = sphi 0, %s113
      %s115 = sphi 0, %s113
      %s116 = sphi 0, %s115
      %s130 = sphi 0, %s116
      %s134 = sphi 0, %s134
      %s136 = sphi 0, %s134
      %s137 = sphi 0, %s136
      %s151 = sphi 0, %s137
      %s159 = sphi 0, %s161
      %s162 = sphi 0, %s159
      %s163 = sphi 0, %s162
      %s179 = sphi 0, %s163
    $region4: #{tpu_custom_call.1} parent=1 // loop_header_branch
      %17 = sbr.rel (%p15) target = $region8
    $region5: #{tpu_custom_call.1} parent=1 // loop_body
      %s19 = ssub.s32 %s14, 1
      %s20 = ssub.s32 %s14, 2
      %s27 = sadd.s32 1, %s22
      %p28 = scmp.ge.s32.totalorder %s27, 2
      %s29 = scalar_select %p28, 0, %s27
      %s30 = sadd.s32 1, %s21
      %s31 = scalar_select %p28, %s30, %s21
      %p32 = scmp.ge.s32.totalorder %s31, 2
      %s33 = scalar_select %p32, 0, %s31
      %s34 = ssub.s32 %s21, %s33
      %s35 = ssub.s32 %s22, %s29
      %s36 = sor.u32 %s34, %s35
      %p37 = scmp.eq.s32.totalorder %s36, 0
      %s39 = sadd.s32 %s38, 1
      %s40 = scalar_select %p37, %s38, %s39
      %p43 = pneg %p37
      %p44 = scmp.eq.s32.totalorder %s14, 3
      %p45 = por %p43, %p44
      %p46 = scmp.ne.s32.totalorder %s38, %s41
      %p47 = scmp.eq.s32.totalorder %s14, 0
      %p48 = por %p46, %p47
      %p49 = scmp.ne.s32.totalorder %s38, %s41
      %p50 = scmp.eq.s32.totalorder %s19, 3
      %p51 = por %p49, %p50
      %p52 = scmp.ne.s32.totalorder %s41, %s42
      %p53 = scmp.eq.s32.totalorder %s19, 0
      %p54 = por %p52, %p53
      %p55 = scmp.ne.s32.totalorder %s41, %s42
      %p56 = scmp.eq.s32.totalorder %s20, 3
      %p57 = por %p55, %p56
      %p59 = scmp.ne.s32.totalorder %s42, %s58
      %p60 = scmp.eq.s32.totalorder %s20, 0
      %p61 = por %p59, %p60
      %s62 = smul.u32 %s21, 2
      %s63 = sadd.s32 %s62, %s22
      %s64 = smul.u32 %s33, 2
      %s65 = sadd.s32 %s64, %s29
      %s66 = ssub.s32 %s63, %s65
      %p67 = scmp.eq.s32.totalorder %s66, 0
      %s69 = sadd.s32 %s68, 1
      %s70 = scalar_select %p67, %s68, %s69
      %p73 = pneg %p67
      %p74 = scmp.eq.s32.totalorder %s14, 3
      %p75 = por %p73, %p74
      %p76 = scmp.ne.s32.totalorder %s68, %s71
      %p77 = scmp.eq.s32.totalorder %s14, 0
      %p78 = por %p76, %p77
      %p79 = scmp.ne.s32.totalorder %s68, %s71
      %p80 = scmp.eq.s32.totalorder %s19, 3
      %p81 = por %p79, %p80
      %p82 = scmp.ne.s32.totalorder %s71, %s72
      %p83 = scmp.eq.s32.totalorder %s19, 0
      %p84 = por %p82, %p83
      %p85 = scmp.ne.s32.totalorder %s71, %s72
      %p86 = scmp.eq.s32.totalorder %s20, 3
      %p87 = por %p85, %p86
      %p89 = scmp.ne.s32.totalorder %s72, %s88
      %p90 = scmp.eq.s32.totalorder %s20, 0
      %p91 = por %p89, %p90
      %s93 = sadd.s32 %s92, 1
      %p96 = scmp.eq.s32.totalorder %s14, 3
      %p97 = scmp.ne.s32.totalorder %s92, %s94
      %p98 = scmp.eq.s32.totalorder %s14, 0
      %p99 = por %p97, %p98
      %p100 = scmp.ne.s32.totalorder %s92, %s94
      %p101 = scmp.eq.s32.totalorder %s19, 3
      %p102 = por %p100, %p101
      %p103 = scmp.ne.s32.totalorder %s94, %s95
      %p104 = scmp.eq.s32.totalorder %s19, 0
      %p105 = por %p103, %p104
      %p106 = scmp.ne.s32.totalorder %s94, %s95
      %p107 = scmp.eq.s32.totalorder %s20, 3
      %p108 = por %p106, %p107
      %p110 = scmp.ne.s32.totalorder %s95, %s109
      %p111 = scmp.eq.s32.totalorder %s20, 0
      %p112 = por %p110, %p111
      %s114 = sadd.s32 %s113, 1
      %p117 = scmp.eq.s32.totalorder %s14, 3
      %p118 = scmp.ne.s32.totalorder %s113, %s115
      %p119 = scmp.eq.s32.totalorder %s14, 0
      %p120 = por %p118, %p119
      %p121 = scmp.ne.s32.totalorder %s113, %s115
      %p122 = scmp.eq.s32.totalorder %s19, 3
      %p123 = por %p121, %p122
      %p124 = scmp.ne.s32.totalorder %s115, %s116
      %p125 = scmp.eq.s32.totalorder %s19, 0
      %p126 = por %p124, %p125
      %p127 = scmp.ne.s32.totalorder %s115, %s116
      %p128 = scmp.eq.s32.totalorder %s20, 3
      %p129 = por %p127, %p128
      %p131 = scmp.ne.s32.totalorder %s116, %s130
      %p132 = scmp.eq.s32.totalorder %s20, 0
      %p133 = por %p131, %p132
      %s135 = sadd.s32 %s134, 1
      %p138 = scmp.eq.s32.totalorder %s14, 3
      %p139 = scmp.ne.s32.totalorder %s134, %s136
      %p140 = scmp.eq.s32.totalorder %s14, 0
      %p141 = por %p139, %p140
      %p142 = scmp.ne.s32.totalorder %s134, %s136
      %p143 = scmp.eq.s32.totalorder %s19, 3
      %p144 = por %p142, %p143
      %p145 = scmp.ne.s32.totalorder %s136, %s137
      %p146 = scmp.eq.s32.totalorder %s19, 0
      %p147 = por %p145, %p146
      %p148 = scmp.ne.s32.totalorder %s136, %s137
      %p149 = scmp.eq.s32.totalorder %s20, 3
      %p150 = por %p148, %p149
      %p152 = scmp.ne.s32.totalorder %s137, %s151
      %p153 = scmp.eq.s32.totalorder %s20, 0
      %p154 = por %p152, %p153
      %s155 = ssub.s32 %s21, %s33
      %s156 = ssub.s32 %s22, %s29
      %s157 = sor.u32 %s155, %s156
      %p158 = scmp.eq.s32.totalorder %s157, 0
      %s160 = sadd.s32 %s159, 1
      %s161 = scalar_select %p158, %s159, %s160
      %p164 = pneg %p158
      %p165 = scmp.eq.s32.totalorder %s14, 3
      %p166 = por %p164, %p165
      %p167 = scmp.ne.s32.totalorder %s159, %s162
      %p168 = scmp.eq.s32.totalorder %s14, 0
      %p169 = por %p167, %p168
      %p170 = scmp.ne.s32.totalorder %s159, %s162
      %p171 = scmp.eq.s32.totalorder %s19, 3
      %p172 = por %p170, %p171
      %p173 = scmp.ne.s32.totalorder %s162, %s163
      %p174 = scmp.eq.s32.totalorder %s19, 0
      %p175 = por %p173, %p174
      %p176 = scmp.ne.s32.totalorder %s162, %s163
      %p177 = scmp.eq.s32.totalorder %s20, 3
      %p178 = por %p176, %p177
      %p180 = scmp.ne.s32.totalorder %s163, %s179
      %p181 = scmp.eq.s32.totalorder %s20, 0
      %p182 = por %p180, %p181
      %p183 = scmp.le.s32.totalorder 1, %s14
      %p184 = scmp.lt.s32.totalorder %s14, 5
      %p185 = pnand %p183, %p184
      %p186 = pneg %p185
      // Predicated region
      $region9: #{tpu_custom_call.1} parent=5 // pred_check
        _
      $region10: #{tpu_custom_call.1} parent=5 // pred_check_branch
        %188 = sbr.rel (%p185) target = $region12
      $region11: #{tpu_custom_call.1} parent=5 // pred_region
        %s189 = ssub.s32 %s14, 1
        // Predicated region
        $region13: #{tpu_custom_call.1} parent=11 // pred_check
          %p190 = pneg %p105
        $region14: #{tpu_custom_call.1} parent=11 // pred_check_branch
          %192 = sbr.rel (%p190) target = $region16
        $region15: #{tpu_custom_call.1} parent=11 // pred_region
          _
        $region16: #{tpu_custom_call.1} parent=11 // pred_fallthru
          _
        // Predicated region
        $region17: #{tpu_custom_call.1} parent=11 // pred_check
          %p193 = pneg %p126
        $region18: #{tpu_custom_call.1} parent=11 // pred_check_branch
          %195 = sbr.rel (%p193) target = $region20
        $region19: #{tpu_custom_call.1} parent=11 // pred_region
          _
        $region20: #{tpu_custom_call.1} parent=11 // pred_fallthru
          _
        // Predicated region
        $region21: #{tpu_custom_call.1} parent=11 // pred_check
          %p196 = pneg %p147
        $region22: #{tpu_custom_call.1} parent=11 // pred_check_branch
          %198 = sbr.rel (%p196) target = $region24
        $region23: #{tpu_custom_call.1} parent=11 // pred_region
          _
        $region24: #{tpu_custom_call.1} parent=11 // pred_fallthru
          _
      $region12: #{tpu_custom_call.1} parent=5 // pred_fallthru
        _
      %p199 = scmp.lt.s32.totalorder %s14, 4
      // Predicated region
      $region25: #{tpu_custom_call.1} parent=5 // pred_check
        %p200 = pneg %p199
      $region26: #{tpu_custom_call.1} parent=5 // pred_check_branch
        %202 = sbr.rel (%p200) target = $region28
      $region27: #{tpu_custom_call.1} parent=5 // pred_region
        // Predicated region
        $region29: #{tpu_custom_call.1} parent=27 // pred_check
          %p203 = pneg %p48
        $region30: #{tpu_custom_call.1} parent=27 // pred_check_branch
          %205 = sbr.rel (%p203) target = $region32
        $region31: #{tpu_custom_call.1} parent=27 // pred_region
          %p206 = scmp.lt.s32.totalorder %s21, 1
          %s207 = scalar_select %p206, %s21, 1
          %p208 = scmp.lt.s32.totalorder %s22, 1
          %s209 = scalar_select %p208, %s22, 1
          %s210 = smul.addr %s207, 2
          %s211 = sadd.s32 %s209, %s210
          %s212 = smul.addr %s211, 4
          %s213 = scalar_lea.vmem %s0, %s212
        $region32: #{tpu_custom_call.1} parent=27 // pred_fallthru
          _
        // Predicated region
        $region33: #{tpu_custom_call.1} parent=27 // pred_check
          %p214 = pneg %p78
        $region34: #{tpu_custom_call.1} parent=27 // pred_check_branch
          %216 = sbr.rel (%p214) target = $region36
        $region35: #{tpu_custom_call.1} parent=27 // pred_region
          %s217 = smul.u32 %s21, 2
          %s218 = sadd.s32 %s217, %s22
          %p219 = scmp.lt.s32.totalorder %s218, 3
          %s220 = scalar_select %p219, %s218, 3
          %s221 = smul.addr %s220, 2
          %s222 = smul.addr %s221, 4
          %s223 = scalar_lea.vmem %s1, %s222
          %s224 = smul.u32 %s21, 2
          %s225 = sadd.s32 %s224, %s22
        $region36: #{tpu_custom_call.1} parent=27 // pred_fallthru
          _
      $region28: #{tpu_custom_call.1} parent=5 // pred_fallthru
        _
      %p226 = scmp.le.s32.totalorder 1, %s14
      %p227 = scmp.lt.s32.totalorder %s14, 5
      %p228 = pnand %p226, %p227
      %p229 = pneg %p228
      // Predicated region
      $region37: #{tpu_custom_call.1} parent=5 // pred_check
        _
      $region38: #{tpu_custom_call.1} parent=5 // pred_check_branch
        %231 = sbr.rel (%p228) target = $region40
      $region39: #{tpu_custom_call.1} parent=5 // pred_region
        %s232 = ssub.s32 %s14, 1
        %p233 = scmp.lt.s32.totalorder %s23, 1
        %s234 = scalar_select %p233, %s23, 1
        %p235 = scmp.lt.s32.totalorder %s24, 1
        %s236 = scalar_select %p235, %s24, 1
        %s237 = smul.addr %s234, 2
        %s238 = sadd.s32 %s236, %s237
        %s239 = smul.addr %s238, 4
        %s240 = scalar_lea.vmem %s0, %s239
        %p241 = pneg %p54
        %p242 = pneg %p51
        %s243 = smul.u32 %s23, 2
        %s244 = sadd.s32 %s243, %s24
        %p245 = scmp.lt.s32.totalorder %s244, 3
        %s246 = scalar_select %p245, %s244, 3
        %s247 = smul.addr %s246, 2
        %s248 = smul.addr %s247, 4
        %s249 = scalar_lea.vmem %s1, %s248
        %p250 = pneg %p84
        %p251 = pneg %p81
        %p252 = pneg %p105
        %p253 = pneg %p102
        %p254 = pneg %p126
        %p255 = pneg %p123
        %p256 = pneg %p147
        %p257 = pneg %p144
        %p258 = pneg %p175
        %p259 = pneg %p172
        %s260 = sand.u32 %s162, 1
        %s261 = scalar_lea.sflag [#allocation4], %s260
        %s262 = sand.u32 %s162, 1
        %s263 = smul.addr %s262, 4
        %s264 = scalar_lea.vmem [#allocation3], %s263
        %p265 = scmp.lt.s32.totalorder %s23, 1
        %s266 = scalar_select %p265, %s23, 1
        %p267 = scmp.lt.s32.totalorder %s24, 1
        %s268 = scalar_select %p267, %s24, 1
        %s269 = smul.addr %s266, 2
        %s270 = sadd.s32 %s268, %s269
        %s271 = smul.addr %s270, 4
        %s272 = scalar_lea.vmem %s0, %s271
        %s273 = smul.u32 %s23, 2
        %s274 = sadd.s32 %s273, %s24
        %p275 = scmp.lt.s32.totalorder %s274, 3
        %s276 = scalar_select %p275, %s274, 3
        %s277 = smul.addr %s276, 2
        %s278 = smul.addr %s277, 4
        %s279 = scalar_lea.vmem %s1, %s278
        %s280 = smul.u32 %s23, 2
        %s281 = sadd.s32 %s280, %s24
        %v282 = vld [vmem:[%s279] sm:$0xf]
        %284 = vrot.lane.b32.xlu0 %v282, 1
        %v285 = vpop.permute.xlu0 %284
        %vm287 = vcmask 134152
        %288 = vst.msk [vmem:[#allocation2] sm:$0xf] %vm287, %v285
        %v289 = vld [vmem:[%s272] sm:$0xf]
        %291 = vrot.lane.b32.xlu0 %v289, 17
        %v292 = vpop.permute.xlu0 %291
        %v293 = vrot.slane %v292, 4
        %vm294 = vcmask 138240
        %v295 = vsel %vm294, %v293, %v292
        %vm297 = vcmask 1043592
        %vm298 = vcmask 138244
        %vm299 = vmor %vm298, %vm297
        %300 = vst.msk [vmem:[#allocation2] sm:$0xff] %vm299, %v295
        %s301 = scalar_lea.vmem %s279, 4
        %v302 = vld [vmem:[%s301] sm:$0xf]
        %304 = vrot.lane.b32.xlu0 %v302, 17
        %v305 = vpop.permute.xlu0 %304
        %vm307 = vcmask 265352
        %308 = vst.msk [vmem:[#allocation2 + $0x4] sm:$0xf] %vm307, %v305
        %v309 = vld [vmem:[%s4] sm:$0x1]
        %vm310 = vcmp.ne.f32.partialorder %v309, 0.0
        %v311 = vld [vmem:[%s4 + $0x1] sm:$0x1]
        %vm312 = vcmp.ne.f32.partialorder %v311, 0.0
        %v313 = vld [vmem:[#allocation2] sm:$0xf]
        %v314 = vsel %vm310, 1, 0
        %v315 = vlaneseq
        %v316 = vshrl.u32 %v315, 7
        %v317 = vsub.s32 0, %v316
        %v318 = vrot.slane %v314, %v317
        %vm319 = vcmp.eq.s32.totalorder %v318, 1
        %v320 = vsel %vm319, %v313, 0.0
        %v321 = vld [vmem:[%s2] sm:$0xf]
        %v322 = vld [vmem:[#allocation2] sm:$0xff]
        %s323 = scalar_lea.vmem %s2, 4
        %v324 = vld [vmem:[%s323] sm:$0xf]
        %v326 = vcombine.high %v322, %v322
        %327 = vrot.lane.b32.xlu0 %v322, 127
        %v328 = vpop.permute.xlu0 %327
        %329 = vrot.lane.b32.xlu0 %v326, 127
        %v330 = vpop.permute.xlu0 %329
        %vm331 = vcmask 1039360
        %v332 = vsel %vm331, %v328, %v330
        %vm333 = vcmask 31744
        %v335 = vsel %vm333, %v324, 0
        %vm337 = vcmask 1043456
        %v338 = vsel %vm337, %v332, 0
        %340 = vmatprep.subr.mxu0 0.0
        %341 = vmatpush1.msra.mxu0 %v338
        %342 = vmatprep.subr.mxu0 0.0
        %343 = vmatpush1.msra.mxu0 0.0
        %344 = vmatprep.subr.mxu0 0.0
        %345 = vmatpush1.msra.mxu0 0.0
        %346 = vmatprep.subr.mxu0 0.0
        %347 = vmatpush1.msra.mxu0 0.0
        %348 = vmatprep.subr.mxu0 0.0
        %349 = vmatpush1.msra.mxu0 0.0
        %350 = vmatprep.subr.mxu0 0.0
        %351 = vmatpush1.msra.mxu0 0.0
        %352 = vmatprep.subr.mxu0 0.0
        %353 = vmatpush1.msra.mxu0 0.0
        %354 = vmatprep.subr.mxu0 0.0
        %355 = vmatpush1.msra.mxu0 0.0
        %356 = vmatprep.subr.mxu0 0.0
        %357 = vmatpush1.msra.mxu0 0.0
        %358 = vmatprep.subr.mxu0 0.0
        %359 = vmatpush1.msra.mxu0 0.0
        %360 = vmatprep.subr.mxu0 0.0
        %361 = vmatpush1.msra.mxu0 0.0
        %362 = vmatprep.subr.mxu0 0.0
        %363 = vmatpush1.msra.mxu0 0.0
        %364 = vmatprep.subr.mxu0 0.0
        %365 = vmatpush1.msra.mxu0 0.0
        %366 = vmatprep.subr.mxu0 0.0
        %367 = vmatpush1.msra.mxu0 0.0
        %368 = vmatprep.subr.mxu0 0.0
        %369 = vmatpush1.msra.mxu0 0.0
        %370 = vmatprep.subr.mxu0 0.0
        %371 = vmatpush1.msra.mxu0 0.0
        %372 = vmatprep.subr.mxu0 0.0
        %373 = vmatpush1.msra.mxu0 0.0
        %374 = vmatprep.subr.mxu0 0.0
        %375 = vmatpush1.msra.mxu0 0.0
        %376 = vmatprep.subr.mxu0 0.0
        %377 = vmatpush1.msra.mxu0 0.0
        %378 = vmatprep.subr.mxu0 0.0
        %379 = vmatpush1.msra.mxu0 0.0
        %380 = vmatprep.subr.mxu0 0.0
        %381 = vmatpush1.msra.mxu0 0.0
        %382 = vmatprep.subr.mxu0 0.0
        %383 = vmatpush1.msra.mxu0 0.0
        %384 = vmatprep.subr.mxu0 0.0
        %385 = vmatpush1.msra.mxu0 0.0
        %386 = vmatprep.subr.mxu0 0.0
        %387 = vmatpush1.msra.mxu0 0.0
        %388 = vmatprep.subr.mxu0 0.0
        %389 = vmatpush1.msra.mxu0 0.0
        %390 = vmatprep.subr.mxu0 0.0
        %391 = vmatpush1.msra.mxu0 0.0
        %392 = vmatprep.subr.mxu0 0.0
        %393 = vmatpush1.msra.mxu0 0.0
        %394 = vmatprep.subr.mxu0 0.0
        %395 = vmatpush1.msra.mxu0 0.0
        %396 = vmatprep.subr.mxu0 0.0
        %397 = vmatpush1.msra.mxu0 0.0
        %398 = vmatprep.subr.mxu0 0.0
        %399 = vmatpush1.msra.mxu0 0.0
        %400 = vmatprep.subr.mxu0 0.0
        %401 = vmatpush1.msra.mxu0 0.0
        %402 = vmatprep.subr.mxu0 0.0
        %403 = vmatpush1.msra.mxu0 0.0
        %404 = vmatprep.mubr.f32.mxu0 0.0
        %405 = vmatmul.mubr.f32.gmra.mrb[0].mxu0 %v335
        %v406 = vpop.f32.mrb[0].mxu0
        %v407 = vadd.f32 0.0, %v406
        %v408 = vpop.f32.mrb[0].mxu0
        %409 = vdwg.mxu0
        %v411 = vsel %vm333, %v321, 0
        %v414 = vsel %vm337, %v320, 0
        %416 = vmatprep.subr.mxu0 0.0
        %417 = vmatpush1.msra.mxu0 %v414
        %418 = vmatprep.subr.mxu0 0.0
        %419 = vmatpush1.msra.mxu0 0.0
        %420 = vmatprep.subr.mxu0 0.0
        %421 = vmatpush1.msra.mxu0 0.0
        %422 = vmatprep.subr.mxu0 0.0
        %423 = vmatpush1.msra.mxu0 0.0
        %424 = vmatprep.subr.mxu0 0.0
        %425 = vmatpush1.msra.mxu0 0.0
        %426 = vmatprep.subr.mxu0 0.0
        %427 = vmatpush1.msra.mxu0 0.0
        %428 = vmatprep.subr.mxu0 0.0
        %429 = vmatpush1.msra.mxu0 0.0
        %430 = vmatprep.subr.mxu0 0.0
        %431 = vmatpush1.msra.mxu0 0.0
        %432 = vmatprep.subr.mxu0 0.0
        %433 = vmatpush1.msra.mxu0 0.0
        %434 = vmatprep.subr.mxu0 0.0
        %435 = vmatpush1.msra.mxu0 0.0
        %436 = vmatprep.subr.mxu0 0.0
        %437 = vmatpush1.msra.mxu0 0.0
        %438 = vmatprep.subr.mxu0 0.0
        %439 = vmatpush1.msra.mxu0 0.0
        %440 = vmatprep.subr.mxu0 0.0
        %441 = vmatpush1.msra.mxu0 0.0
        %442 = vmatprep.subr.mxu0 0.0
        %443 = vmatpush1.msra.mxu0 0.0
        %444 = vmatprep.subr.mxu0 0.0
        %445 = vmatpush1.msra.mxu0 0.0
        %446 = vmatprep.subr.mxu0 0.0
        %447 = vmatpush1.msra.mxu0 0.0
        %448 = vmatprep.subr.mxu0 0.0
        %449 = vmatpush1.msra.mxu0 0.0
        %450 = vmatprep.subr.mxu0 0.0
        %451 = vmatpush1.msra.mxu0 0.0
        %452 = vmatprep.subr.mxu0 0.0
        %453 = vmatpush1.msra.mxu0 0.0
        %454 = vmatprep.subr.mxu0 0.0
        %455 = vmatpush1.msra.mxu0 0.0
        %456 = vmatprep.subr.mxu0 0.0
        %457 = vmatpush1.msra.mxu0 0.0
        %458 = vmatprep.subr.mxu0 0.0
        %459 = vmatpush1.msra.mxu0 0.0
        %460 = vmatprep.subr.mxu0 0.0
        %461 = vmatpush1.msra.mxu0 0.0
        %462 = vmatprep.subr.mxu0 0.0
        %463 = vmatpush1.msra.mxu0 0.0
        %464 = vmatprep.subr.mxu0 0.0
        %465 = vmatpush1.msra.mxu0 0.0
        %466 = vmatprep.subr.mxu0 0.0
        %467 = vmatpush1.msra.mxu0 0.0
        %468 = vmatprep.subr.mxu0 0.0
        %469 = vmatpush1.msra.mxu0 0.0
        %470 = vmatprep.subr.mxu0 0.0
        %471 = vmatpush1.msra.mxu0 0.0
        %472 = vmatprep.subr.mxu0 0.0
        %473 = vmatpush1.msra.mxu0 0.0
        %474 = vmatprep.subr.mxu0 0.0
        %475 = vmatpush1.msra.mxu0 0.0
        %476 = vmatprep.subr.mxu0 0.0
        %477 = vmatpush1.msra.mxu0 0.0
        %478 = vmatprep.subr.mxu0 0.0
        %479 = vmatpush1.msra.mxu0 0.0
        %480 = vmatprep.mubr.f32.mxu0 0.0
        %481 = vmatmul.mubr.f32.gmra.mrb[0].mxu0 %v411
        %v482 = vpop.f32.mrb[0].mxu0
        %v483 = vadd.f32 %v407, %v482
        %v484 = vpop.f32.mrb[0].mxu0
        %485 = vdwg.mxu0
        %v486 = vld [vmem:[#allocation2] sm:$0xff]
        %v487 = vsel %vm312, 1, 0
        %v488 = vlaneseq
        %v489 = vshrl.u32 %v488, 7
        %v490 = vsub.s32 0, %v489
        %v491 = vrot.slane %v487, %v490
        %vm492 = vcmp.eq.s32.totalorder %v491, 1
        %v494 = vcombine.high %v486, %v486
        %495 = vrot.lane.b32.xlu0 %v486, 126
        %v496 = vpop.permute.xlu0 %495
        %497 = vrot.lane.b32.xlu0 %v494, 126
        %v498 = vpop.permute.xlu0 %497
        %vm499 = vcmask 1031168
        %v500 = vsel %vm499, %v496, %v498
        %v502 = vsel %vm492, %v500, 0.0
        %s503 = scalar_lea.vmem %s2, 8
        %v504 = vld [vmem:[%s503] sm:$0xf]
        %v506 = vsel %vm333, %v504, 0
        %v509 = vsel %vm337, %v502, 0
        %511 = vmatprep.subr.mxu0 0.0
        %512 = vmatpush1.msra.mxu0 %v509
        %513 = vmatprep.subr.mxu0 0.0
        %514 = vmatpush1.msra.mxu0 0.0
        %515 = vmatprep.subr.mxu0 0.0
        %516 = vmatpush1.msra.mxu0 0.0
        %517 = vmatprep.subr.mxu0 0.0
        %518 = vmatpush1.msra.mxu0 0.0
        %519 = vmatprep.subr.mxu0 0.0
        %520 = vmatpush1.msra.mxu0 0.0
        %521 = vmatprep.subr.mxu0 0.0
        %522 = vmatpush1.msra.mxu0 0.0
        %523 = vmatprep.subr.mxu0 0.0
        %524 = vmatpush1.msra.mxu0 0.0
        %525 = vmatprep.subr.mxu0 0.0
        %526 = vmatpush1.msra.mxu0 0.0
        %527 = vmatprep.subr.mxu0 0.0
        %528 = vmatpush1.msra.mxu0 0.0
        %529 = vmatprep.subr.mxu0 0.0
        %530 = vmatpush1.msra.mxu0 0.0
        %531 = vmatprep.subr.mxu0 0.0
        %532 = vmatpush1.msra.mxu0 0.0
        %533 = vmatprep.subr.mxu0 0.0
        %534 = vmatpush1.msra.mxu0 0.0
        %535 = vmatprep.subr.mxu0 0.0
        %536 = vmatpush1.msra.mxu0 0.0
        %537 = vmatprep.subr.mxu0 0.0
        %538 = vmatpush1.msra.mxu0 0.0
        %539 = vmatprep.subr.mxu0 0.0
        %540 = vmatpush1.msra.mxu0 0.0
        %541 = vmatprep.subr.mxu0 0.0
        %542 = vmatpush1.msra.mxu0 0.0
        %543 = vmatprep.subr.mxu0 0.0
        %544 = vmatpush1.msra.mxu0 0.0
        %545 = vmatprep.subr.mxu0 0.0
        %546 = vmatpush1.msra.mxu0 0.0
        %547 = vmatprep.subr.mxu0 0.0
        %548 = vmatpush1.msra.mxu0 0.0
        %549 = vmatprep.subr.mxu0 0.0
        %550 = vmatpush1.msra.mxu0 0.0
        %551 = vmatprep.subr.mxu0 0.0
        %552 = vmatpush1.msra.mxu0 0.0
        %553 = vmatprep.subr.mxu0 0.0
        %554 = vmatpush1.msra.mxu0 0.0
        %555 = vmatprep.subr.mxu0 0.0
        %556 = vmatpush1.msra.mxu0 0.0
        %557 = vmatprep.subr.mxu0 0.0
        %558 = vmatpush1.msra.mxu0 0.0
        %559 = vmatprep.subr.mxu0 0.0
        %560 = vmatpush1.msra.mxu0 0.0
        %561 = vmatprep.subr.mxu0 0.0
        %562 = vmatpush1.msra.mxu0 0.0
        %563 = vmatprep.subr.mxu0 0.0
        %564 = vmatpush1.msra.mxu0 0.0
        %565 = vmatprep.subr.mxu0 0.0
        %566 = vmatpush1.msra.mxu0 0.0
        %567 = vmatprep.subr.mxu0 0.0
        %568 = vmatpush1.msra.mxu0 0.0
        %569 = vmatprep.subr.mxu0 0.0
        %570 = vmatpush1.msra.mxu0 0.0
        %571 = vmatprep.subr.mxu0 0.0
        %572 = vmatpush1.msra.mxu0 0.0
        %573 = vmatprep.subr.mxu0 0.0
        %574 = vmatpush1.msra.mxu0 0.0
        %575 = vmatprep.mubr.f32.mxu0 0.0
        %576 = vmatmul.mubr.f32.gmra.mrb[0].mxu0 %v506
        %v577 = vpop.f32.mrb[0].mxu0
        %v578 = vadd.f32 0.0, %v577
        %v579 = vpop.f32.mrb[0].mxu0
        %580 = vdwg.mxu0
        %v581 = vadd.f32 %v483, %v578
        %v582 = vld [vmem:[#allocation2] sm:$0xff]
        %v584 = vcombine.high %v582, %v582
        %585 = vrot.lane.b32.xlu0 %v582, 112
        %v586 = vpop.permute.xlu0 %585
        %587 = vrot.lane.b32.xlu0 %v584, 112
        %v588 = vpop.permute.xlu0 %587
        %vm589 = vcmask 916480
        %v590 = vsel %vm589, %v586, %v588
        %v592 = vsel %vm319, %v590, 0.0
        %s593 = scalar_lea.vmem %s2, 12
        %v594 = vld [vmem:[%s593] sm:$0xf]
        %v596 = vsel %vm333, %v594, 0
        %v599 = vsel %vm337, %v592, 0
        %601 = vmatprep.subr.mxu0 0.0
        %602 = vmatpush1.msra.mxu0 %v599
        %603 = vmatprep.subr.mxu0 0.0
        %604 = vmatpush1.msra.mxu0 0.0
        %605 = vmatprep.subr.mxu0 0.0
        %606 = vmatpush1.msra.mxu0 0.0
        %607 = vmatprep.subr.mxu0 0.0
        %608 = vmatpush1.msra.mxu0 0.0
        %609 = vmatprep.subr.mxu0 0.0
        %610 = vmatpush1.msra.mxu0 0.0
        %611 = vmatprep.subr.mxu0 0.0
        %612 = vmatpush1.msra.mxu0 0.0
        %613 = vmatprep.subr.mxu0 0.0
        %614 = vmatpush1.msra.mxu0 0.0
        %615 = vmatprep.subr.mxu0 0.0
        %616 = vmatpush1.msra.mxu0 0.0
        %617 = vmatprep.subr.mxu0 0.0
        %618 = vmatpush1.msra.mxu0 0.0
        %619 = vmatprep.subr.mxu0 0.0
        %620 = vmatpush1.msra.mxu0 0.0
        %621 = vmatprep.subr.mxu0 0.0
        %622 = vmatpush1.msra.mxu0 0.0
        %623 = vmatprep.subr.mxu0 0.0
        %624 = vmatpush1.msra.mxu0 0.0
        %625 = vmatprep.subr.mxu0 0.0
        %626 = vmatpush1.msra.mxu0 0.0
        %627 = vmatprep.subr.mxu0 0.0
        %628 = vmatpush1.msra.mxu0 0.0
        %629 = vmatprep.subr.mxu0 0.0
        %630 = vmatpush1.msra.mxu0 0.0
        %631 = vmatprep.subr.mxu0 0.0
        %632 = vmatpush1.msra.mxu0 0.0
        %633 = vmatprep.subr.mxu0 0.0
        %634 = vmatpush1.msra.mxu0 0.0
        %635 = vmatprep.subr.mxu0 0.0
        %636 = vmatpush1.msra.mxu0 0.0
        %637 = vmatprep.subr.mxu0 0.0
        %638 = vmatpush1.msra.mxu0 0.0
        %639 = vmatprep.subr.mxu0 0.0
        %640 = vmatpush1.msra.mxu0 0.0
        %641 = vmatprep.subr.mxu0 0.0
        %642 = vmatpush1.msra.mxu0 0.0
        %643 = vmatprep.subr.mxu0 0.0
        %644 = vmatpush1.msra.mxu0 0.0
        %645 = vmatprep.subr.mxu0 0.0
        %646 = vmatpush1.msra.mxu0 0.0
        %647 = vmatprep.subr.mxu0 0.0
        %648 = vmatpush1.msra.mxu0 0.0
        %649 = vmatprep.subr.mxu0 0.0
        %650 = vmatpush1.msra.mxu0 0.0
        %651 = vmatprep.subr.mxu0 0.0
        %652 = vmatpush1.msra.mxu0 0.0
        %653 = vmatprep.subr.mxu0 0.0
        %654 = vmatpush1.msra.mxu0 0.0
        %655 = vmatprep.subr.mxu0 0.0
        %656 = vmatpush1.msra.mxu0 0.0
        %657 = vmatprep.subr.mxu0 0.0
        %658 = vmatpush1.msra.mxu0 0.0
        %659 = vmatprep.subr.mxu0 0.0
        %660 = vmatpush1.msra.mxu0 0.0
        %661 = vmatprep.subr.mxu0 0.0
        %662 = vmatpush1.msra.mxu0 0.0
        %663 = vmatprep.subr.mxu0 0.0
        %664 = vmatpush1.msra.mxu0 0.0
        %665 = vmatprep.mubr.f32.mxu0 0.0
        %666 = vmatmul.mubr.f32.gmra.mrb[0].mxu0 %v596
        %v667 = vpop.f32.mrb[0].mxu0
        %v668 = vadd.f32 0.0, %v667
        %v669 = vpop.f32.mrb[0].mxu0
        %670 = vdwg.mxu0
        %v671 = vadd.f32 %v581, %v668
        %v672 = vld [vmem:[#allocation2] sm:$0xff]
        %s673 = scalar_lea.vmem %s2, 16
        %v674 = vld [vmem:[%s673] sm:$0xf]
        %v676 = vcombine.high %v672, %v672
        %677 = vrot.lane.b32.xlu0 %v672, 111
        %v678 = vpop.permute.xlu0 %677
        %679 = vrot.lane.b32.xlu0 %v676, 111
        %v680 = vpop.permute.xlu0 %679
        %vm681 = vcmask 908288
        %v682 = vsel %vm681, %v678, %v680
        %v684 = vsel %vm333, %v674, 0
        %v686 = vsel %vm337, %v682, 0
        %688 = vmatprep.subr.mxu0 0.0
        %689 = vmatpush1.msra.mxu0 %v686
        %690 = vmatprep.subr.mxu0 0.0
        %691 = vmatpush1.msra.mxu0 0.0
        %692 = vmatprep.subr.mxu0 0.0
        %693 = vmatpush1.msra.mxu0 0.0
        %694 = vmatprep.subr.mxu0 0.0
        %695 = vmatpush1.msra.mxu0 0.0
        %696 = vmatprep.subr.mxu0 0.0
        %697 = vmatpush1.msra.mxu0 0.0
        %698 = vmatprep.subr.mxu0 0.0
        %699 = vmatpush1.msra.mxu0 0.0
        %700 = vmatprep.subr.mxu0 0.0
        %701 = vmatpush1.msra.mxu0 0.0
        %702 = vmatprep.subr.mxu0 0.0
        %703 = vmatpush1.msra.mxu0 0.0
        %704 = vmatprep.subr.mxu0 0.0
        %705 = vmatpush1.msra.mxu0 0.0
        %706 = vmatprep.subr.mxu0 0.0
        %707 = vmatpush1.msra.mxu0 0.0
        %708 = vmatprep.subr.mxu0 0.0
        %709 = vmatpush1.msra.mxu0 0.0
        %710 = vmatprep.subr.mxu0 0.0
        %711 = vmatpush1.msra.mxu0 0.0
        %712 = vmatprep.subr.mxu0 0.0
        %713 = vmatpush1.msra.mxu0 0.0
        %714 = vmatprep.subr.mxu0 0.0
        %715 = vmatpush1.msra.mxu0 0.0
        %716 = vmatprep.subr.mxu0 0.0
        %717 = vmatpush1.msra.mxu0 0.0
        %718 = vmatprep.subr.mxu0 0.0
        %719 = vmatpush1.msra.mxu0 0.0
        %720 = vmatprep.subr.mxu0 0.0
        %721 = vmatpush1.msra.mxu0 0.0
        %722 = vmatprep.subr.mxu0 0.0
        %723 = vmatpush1.msra.mxu0 0.0
        %724 = vmatprep.subr.mxu0 0.0
        %725 = vmatpush1.msra.mxu0 0.0
        %726 = vmatprep.subr.mxu0 0.0
        %727 = vmatpush1.msra.mxu0 0.0
        %728 = vmatprep.subr.mxu0 0.0
        %729 = vmatpush1.msra.mxu0 0.0
        %730 = vmatprep.subr.mxu0 0.0
        %731 = vmatpush1.msra.mxu0 0.0
        %732 = vmatprep.subr.mxu0 0.0
        %733 = vmatpush1.msra.mxu0 0.0
        %734 = vmatprep.subr.mxu0 0.0
        %735 = vmatpush1.msra.mxu0 0.0
        %736 = vmatprep.subr.mxu0 0.0
        %737 = vmatpush1.msra.mxu0 0.0
        %738 = vmatprep.subr.mxu0 0.0
        %739 = vmatpush1.msra.mxu0 0.0
        %740 = vmatprep.subr.mxu0 0.0
        %741 = vmatpush1.msra.mxu0 0.0
        %742 = vmatprep.subr.mxu0 0.0
        %743 = vmatpush1.msra.mxu0 0.0
        %744 = vmatprep.subr.mxu0 0.0
        %745 = vmatpush1.msra.mxu0 0.0
        %746 = vmatprep.subr.mxu0 0.0
        %747 = vmatpush1.msra.mxu0 0.0
        %748 = vmatprep.subr.mxu0 0.0
        %749 = vmatpush1.msra.mxu0 0.0
        %750 = vmatprep.subr.mxu0 0.0
        %751 = vmatpush1.msra.mxu0 0.0
        %752 = vmatprep.mubr.f32.mxu0 0.0
        %753 = vmatmul.mubr.f32.gmra.mrb[0].mxu0 %v684
        %v754 = vpop.f32.mrb[0].mxu0
        %v755 = vadd.f32 0.0, %v754
        %v756 = vpop.f32.mrb[0].mxu0
        %757 = vdwg.mxu0
        %v758 = vadd.f32 %v671, %v755
        %v759 = vld [vmem:[#allocation2] sm:$0xff]
        %v761 = vcombine.high %v759, %v759
        %762 = vrot.lane.b32.xlu0 %v759, 110
        %v763 = vpop.permute.xlu0 %762
        %764 = vrot.lane.b32.xlu0 %v761, 110
        %v765 = vpop.permute.xlu0 %764
        %vm766 = vcmask 900096
        %v767 = vsel %vm766, %v763, %v765
        %v769 = vsel %vm492, %v767, 0.0
        %s770 = scalar_lea.vmem %s2, 20
        %v771 = vld [vmem:[%s770] sm:$0xf]
        %v773 = vsel %vm333, %v771, 0
        %v776 = vsel %vm337, %v769, 0
        %778 = vmatprep.subr.mxu0 0.0
        %779 = vmatpush1.msra.mxu0 %v776
        %780 = vmatprep.subr.mxu0 0.0
        %781 = vmatpush1.msra.mxu0 0.0
        %782 = vmatprep.subr.mxu0 0.0
        %783 = vmatpush1.msra.mxu0 0.0
        %784 = vmatprep.subr.mxu0 0.0
        %785 = vmatpush1.msra.mxu0 0.0
        %786 = vmatprep.subr.mxu0 0.0
        %787 = vmatpush1.msra.mxu0 0.0
        %788 = vmatprep.subr.mxu0 0.0
        %789 = vmatpush1.msra.mxu0 0.0
        %790 = vmatprep.subr.mxu0 0.0
        %791 = vmatpush1.msra.mxu0 0.0
        %792 = vmatprep.subr.mxu0 0.0
        %793 = vmatpush1.msra.mxu0 0.0
        %794 = vmatprep.subr.mxu0 0.0
        %795 = vmatpush1.msra.mxu0 0.0
        %796 = vmatprep.subr.mxu0 0.0
        %797 = vmatpush1.msra.mxu0 0.0
        %798 = vmatprep.subr.mxu0 0.0
        %799 = vmatpush1.msra.mxu0 0.0
        %800 = vmatprep.subr.mxu0 0.0
        %801 = vmatpush1.msra.mxu0 0.0
        %802 = vmatprep.subr.mxu0 0.0
        %803 = vmatpush1.msra.mxu0 0.0
        %804 = vmatprep.subr.mxu0 0.0
        %805 = vmatpush1.msra.mxu0 0.0
        %806 = vmatprep.subr.mxu0 0.0
        %807 = vmatpush1.msra.mxu0 0.0
        %808 = vmatprep.subr.mxu0 0.0
        %809 = vmatpush1.msra.mxu0 0.0
        %810 = vmatprep.subr.mxu0 0.0
        %811 = vmatpush1.msra.mxu0 0.0
        %812 = vmatprep.subr.mxu0 0.0
        %813 = vmatpush1.msra.mxu0 0.0
        %814 = vmatprep.subr.mxu0 0.0
        %815 = vmatpush1.msra.mxu0 0.0
        %816 = vmatprep.subr.mxu0 0.0
        %817 = vmatpush1.msra.mxu0 0.0
        %818 = vmatprep.subr.mxu0 0.0
        %819 = vmatpush1.msra.mxu0 0.0
        %820 = vmatprep.subr.mxu0 0.0
        %821 = vmatpush1.msra.mxu0 0.0
        %822 = vmatprep.subr.mxu0 0.0
        %823 = vmatpush1.msra.mxu0 0.0
        %824 = vmatprep.subr.mxu0 0.0
        %825 = vmatpush1.msra.mxu0 0.0
        %826 = vmatprep.subr.mxu0 0.0
        %827 = vmatpush1.msra.mxu0 0.0
        %828 = vmatprep.subr.mxu0 0.0
        %829 = vmatpush1.msra.mxu0 0.0
        %830 = vmatprep.subr.mxu0 0.0
        %831 = vmatpush1.msra.mxu0 0.0
        %832 = vmatprep.subr.mxu0 0.0
        %833 = vmatpush1.msra.mxu0 0.0
        %834 = vmatprep.subr.mxu0 0.0
        %835 = vmatpush1.msra.mxu0 0.0
        %836 = vmatprep.subr.mxu0 0.0
        %837 = vmatpush1.msra.mxu0 0.0
        %838 = vmatprep.subr.mxu0 0.0
        %839 = vmatpush1.msra.mxu0 0.0
        %840 = vmatprep.subr.mxu0 0.0
        %841 = vmatpush1.msra.mxu0 0.0
        %842 = vmatprep.mubr.f32.mxu0 0.0
        %843 = vmatmul.mubr.f32.gmra.mrb[0].mxu0 %v773
        %v844 = vpop.f32.mrb[0].mxu0
        %v845 = vadd.f32 0.0, %v844
        %v846 = vpop.f32.mrb[0].mxu0
        %847 = vdwg.mxu0
        %v848 = vadd.f32 %v758, %v845
        %v849 = vld [vmem:[#allocation2] sm:$0xff]
        %v851 = vcombine.high %v849, %v849
        %852 = vrot.lane.b32.xlu0 %v849, 96
        %v853 = vpop.permute.xlu0 %852
        %854 = vrot.lane.b32.xlu0 %v851, 96
        %v855 = vpop.permute.xlu0 %854
        %vm856 = vcmask 785408
        %v857 = vsel %vm856, %v853, %v855
        %v859 = vsel %vm319, %v857, 0.0
        %s860 = scalar_lea.vmem %s2, 24
        %v861 = vld [vmem:[%s860] sm:$0xf]
        %v863 = vsel %vm333, %v861, 0
        %v866 = vsel %vm337, %v859, 0
        %868 = vmatprep.subr.mxu0 0.0
        %869 = vmatpush1.msra.mxu0 %v866
        %870 = vmatprep.subr.mxu0 0.0
        %871 = vmatpush1.msra.mxu0 0.0
        %872 = vmatprep.subr.mxu0 0.0
        %873 = vmatpush1.msra.mxu0 0.0
        %874 = vmatprep.subr.mxu0 0.0
        %875 = vmatpush1.msra.mxu0 0.0
        %876 = vmatprep.subr.mxu0 0.0
        %877 = vmatpush1.msra.mxu0 0.0
        %878 = vmatprep.subr.mxu0 0.0
        %879 = vmatpush1.msra.mxu0 0.0
        %880 = vmatprep.subr.mxu0 0.0
        %881 = vmatpush1.msra.mxu0 0.0
        %882 = vmatprep.subr.mxu0 0.0
        %883 = vmatpush1.msra.mxu0 0.0
        %884 = vmatprep.subr.mxu0 0.0
        %885 = vmatpush1.msra.mxu0 0.0
        %886 = vmatprep.subr.mxu0 0.0
        %887 = vmatpush1.msra.mxu0 0.0
        %888 = vmatprep.subr.mxu0 0.0
        %889 = vmatpush1.msra.mxu0 0.0
        %890 = vmatprep.subr.mxu0 0.0
        %891 = vmatpush1.msra.mxu0 0.0
        %892 = vmatprep.subr.mxu0 0.0
        %893 = vmatpush1.msra.mxu0 0.0
        %894 = vmatprep.subr.mxu0 0.0
        %895 = vmatpush1.msra.mxu0 0.0
        %896 = vmatprep.subr.mxu0 0.0
        %897 = vmatpush1.msra.mxu0 0.0
        %898 = vmatprep.subr.mxu0 0.0
        %899 = vmatpush1.msra.mxu0 0.0
        %900 = vmatprep.subr.mxu0 0.0
        %901 = vmatpush1.msra.mxu0 0.0
        %902 = vmatprep.subr.mxu0 0.0
        %903 = vmatpush1.msra.mxu0 0.0
        %904 = vmatprep.subr.mxu0 0.0
        %905 = vmatpush1.msra.mxu0 0.0
        %906 = vmatprep.subr.mxu0 0.0
        %907 = vmatpush1.msra.mxu0 0.0
        %908 = vmatprep.subr.mxu0 0.0
        %909 = vmatpush1.msra.mxu0 0.0
        %910 = vmatprep.subr.mxu0 0.0
        %911 = vmatpush1.msra.mxu0 0.0
        %912 = vmatprep.subr.mxu0 0.0
        %913 = vmatpush1.msra.mxu0 0.0
        %914 = vmatprep.subr.mxu0 0.0
        %915 = vmatpush1.msra.mxu0 0.0
        %916 = vmatprep.subr.mxu0 0.0
        %917 = vmatpush1.msra.mxu0 0.0
        %918 = vmatprep.subr.mxu0 0.0
        %919 = vmatpush1.msra.mxu0 0.0
        %920 = vmatprep.subr.mxu0 0.0
        %921 = vmatpush1.msra.mxu0 0.0
        %922 = vmatprep.subr.mxu0 0.0
        %923 = vmatpush1.msra.mxu0 0.0
        %924 = vmatprep.subr.mxu0 0.0
        %925 = vmatpush1.msra.mxu0 0.0
        %926 = vmatprep.subr.mxu0 0.0
        %927 = vmatpush1.msra.mxu0 0.0
        %928 = vmatprep.subr.mxu0 0.0
        %929 = vmatpush1.msra.mxu0 0.0
        %930 = vmatprep.subr.mxu0 0.0
        %931 = vmatpush1.msra.mxu0 0.0
        %932 = vmatprep.mubr.f32.mxu0 0.0
        %933 = vmatmul.mubr.f32.gmra.mrb[0].mxu0 %v863
        %v934 = vpop.f32.mrb[0].mxu0
        %v935 = vadd.f32 0.0, %v934
        %v936 = vpop.f32.mrb[0].mxu0
        %937 = vdwg.mxu0
        %v938 = vadd.f32 %v848, %v935
        %v939 = vld [vmem:[#allocation2] sm:$0xff]
        %s940 = scalar_lea.vmem %s2, 28
        %v941 = vld [vmem:[%s940] sm:$0xf]
        %v943 = vcombine.high %v939, %v939
        %944 = vrot.lane.b32.xlu0 %v939, 95
        %v945 = vpop.permute.xlu0 %944
        %946 = vrot.lane.b32.xlu0 %v943, 95
        %v947 = vpop.permute.xlu0 %946
        %vm948 = vcmask 777216
        %v949 = vsel %vm948, %v945, %v947
        %v951 = vsel %vm333, %v941, 0
        %v953 = vsel %vm337, %v949, 0
        %955 = vmatprep.subr.mxu0 0.0
        %956 = vmatpush1.msra.mxu0 %v953
        %957 = vmatprep.subr.mxu0 0.0
        %958 = vmatpush1.msra.mxu0 0.0
        %959 = vmatprep.subr.mxu0 0.0
        %960 = vmatpush1.msra.mxu0 0.0
        %961 = vmatprep.subr.mxu0 0.0
        %962 = vmatpush1.msra.mxu0 0.0
        %963 = vmatprep.subr.mxu0 0.0
        %964 = vmatpush1.msra.mxu0 0.0
        %965 = vmatprep.subr.mxu0 0.0
        %966 = vmatpush1.msra.mxu0 0.0
        %967 = vmatprep.subr.mxu0 0.0
        %968 = vmatpush1.msra.mxu0 0.0
        %969 = vmatprep.subr.mxu0 0.0
        %970 = vmatpush1.msra.mxu0 0.0
        %971 = vmatprep.subr.mxu0 0.0
        %972 = vmatpush1.msra.mxu0 0.0
        %973 = vmatprep.subr.mxu0 0.0
        %974 = vmatpush1.msra.mxu0 0.0
        %975 = vmatprep.subr.mxu0 0.0
        %976 = vmatpush1.msra.mxu0 0.0
        %977 = vmatprep.subr.mxu0 0.0
        %978 = vmatpush1.msra.mxu0 0.0
        %979 = vmatprep.subr.mxu0 0.0
        %980 = vmatpush1.msra.mxu0 0.0
        %981 = vmatprep.subr.mxu0 0.0
        %982 = vmatpush1.msra.mxu0 0.0
        %983 = vmatprep.subr.mxu0 0.0
        %984 = vmatpush1.msra.mxu0 0.0
        %985 = vmatprep.subr.mxu0 0.0
        %986 = vmatpush1.msra.mxu0 0.0
        %987 = vmatprep.subr.mxu0 0.0
        %988 = vmatpush1.msra.mxu0 0.0
        %989 = vmatprep.subr.mxu0 0.0
        %990 = vmatpush1.msra.mxu0 0.0
        %991 = vmatprep.subr.mxu0 0.0
        %992 = vmatpush1.msra.mxu0 0.0
        %993 = vmatprep.subr.mxu0 0.0
        %994 = vmatpush1.msra.mxu0 0.0
        %995 = vmatprep.subr.mxu0 0.0
        %996 = vmatpush1.msra.mxu0 0.0
        %997 = vmatprep.subr.mxu0 0.0
        %998 = vmatpush1.msra.mxu0 0.0
        %999 = vmatprep.subr.mxu0 0.0
        %1000 = vmatpush1.msra.mxu0 0.0
        %1001 = vmatprep.subr.mxu0 0.0
        %1002 = vmatpush1.msra.mxu0 0.0
        %1003 = vmatprep.subr.mxu0 0.0
        %1004 = vmatpush1.msra.mxu0 0.0
        %1005 = vmatprep.subr.mxu0 0.0
        %1006 = vmatpush1.msra.mxu0 0.0
        %1007 = vmatprep.subr.mxu0 0.0
        %1008 = vmatpush1.msra.mxu0 0.0
        %1009 = vmatprep.subr.mxu0 0.0
        %1010 = vmatpush1.msra.mxu0 0.0
        %1011 = vmatprep.subr.mxu0 0.0
        %1012 = vmatpush1.msra.mxu0 0.0
        %1013 = vmatprep.subr.mxu0 0.0
        %1014 = vmatpush1.msra.mxu0 0.0
        %1015 = vmatprep.subr.mxu0 0.0
        %1016 = vmatpush1.msra.mxu0 0.0
        %1017 = vmatprep.subr.mxu0 0.0
        %1018 = vmatpush1.msra.mxu0 0.0
        %1019 = vmatprep.mubr.f32.mxu0 0.0
        %1020 = vmatmul.mubr.f32.gmra.mrb[0].mxu0 %v951
        %v1021 = vpop.f32.mrb[0].mxu0
        %v1022 = vadd.f32 0.0, %v1021
        %v1023 = vpop.f32.mrb[0].mxu0
        %1024 = vdwg.mxu0
        %v1025 = vadd.f32 %v938, %v1022
        %v1026 = vld [vmem:[#allocation2] sm:$0xff]
        %v1028 = vcombine.high %v1026, %v1026
        %1029 = vrot.lane.b32.xlu0 %v1026, 94
        %v1030 = vpop.permute.xlu0 %1029
        %1031 = vrot.lane.b32.xlu0 %v1028, 94
        %v1032 = vpop.permute.xlu0 %1031
        %vm1033 = vcmask 769024
        %v1034 = vsel %vm1033, %v1030, %v1032
        %v1036 = vsel %vm492, %v1034, 0.0
        %s1037 = scalar_lea.vmem %s2, 32
        %v1038 = vld [vmem:[%s1037] sm:$0xf]
        %v1040 = vsel %vm333, %v1038, 0
        %v1043 = vsel %vm337, %v1036, 0
        %1045 = vmatprep.subr.mxu0 0.0
        %1046 = vmatpush1.msra.mxu0 %v1043
        %1047 = vmatprep.subr.mxu0 0.0
        %1048 = vmatpush1.msra.mxu0 0.0
        %1049 = vmatprep.subr.mxu0 0.0
        %1050 = vmatpush1.msra.mxu0 0.0
        %1051 = vmatprep.subr.mxu0 0.0
        %1052 = vmatpush1.msra.mxu0 0.0
        %1053 = vmatprep.subr.mxu0 0.0
        %1054 = vmatpush1.msra.mxu0 0.0
        %1055 = vmatprep.subr.mxu0 0.0
        %1056 = vmatpush1.msra.mxu0 0.0
        %1057 = vmatprep.subr.mxu0 0.0
        %1058 = vmatpush1.msra.mxu0 0.0
        %1059 = vmatprep.subr.mxu0 0.0
        %1060 = vmatpush1.msra.mxu0 0.0
        %1061 = vmatprep.subr.mxu0 0.0
        %1062 = vmatpush1.msra.mxu0 0.0
        %1063 = vmatprep.subr.mxu0 0.0
        %1064 = vmatpush1.msra.mxu0 0.0
        %1065 = vmatprep.subr.mxu0 0.0
        %1066 = vmatpush1.msra.mxu0 0.0
        %1067 = vmatprep.subr.mxu0 0.0
        %1068 = vmatpush1.msra.mxu0 0.0
        %1069 = vmatprep.subr.mxu0 0.0
        %1070 = vmatpush1.msra.mxu0 0.0
        %1071 = vmatprep.subr.mxu0 0.0
        %1072 = vmatpush1.msra.mxu0 0.0
        %1073 = vmatprep.subr.mxu0 0.0
        %1074 = vmatpush1.msra.mxu0 0.0
        %1075 = vmatprep.subr.mxu0 0.0
        %1076 = vmatpush1.msra.mxu0 0.0
        %1077 = vmatprep.subr.mxu0 0.0
        %1078 = vmatpush1.msra.mxu0 0.0
        %1079 = vmatprep.subr.mxu0 0.0
        %1080 = vmatpush1.msra.mxu0 0.0
        %1081 = vmatprep.subr.mxu0 0.0
        %1082 = vmatpush1.msra.mxu0 0.0
        %1083 = vmatprep.subr.mxu0 0.0
        %1084 = vmatpush1.msra.mxu0 0.0
        %1085 = vmatprep.subr.mxu0 0.0
        %1086 = vmatpush1.msra.mxu0 0.0
        %1087 = vmatprep.subr.mxu0 0.0
        %1088 = vmatpush1.msra.mxu0 0.0
        %1089 = vmatprep.subr.mxu0 0.0
        %1090 = vmatpush1.msra.mxu0 0.0
        %1091 = vmatprep.subr.mxu0 0.0
        %1092 = vmatpush1.msra.mxu0 0.0
        %1093 = vmatprep.subr.mxu0 0.0
        %1094 = vmatpush1.msra.mxu0 0.0
        %1095 = vmatprep.subr.mxu0 0.0
        %1096 = vmatpush1.msra.mxu0 0.0
        %1097 = vmatprep.subr.mxu0 0.0
        %1098 = vmatpush1.msra.mxu0 0.0
        %1099 = vmatprep.subr.mxu0 0.0
        %1100 = vmatpush1.msra.mxu0 0.0
        %1101 = vmatprep.subr.mxu0 0.0
        %1102 = vmatpush1.msra.mxu0 0.0
        %1103 = vmatprep.subr.mxu0 0.0
        %1104 = vmatpush1.msra.mxu0 0.0
        %1105 = vmatprep.subr.mxu0 0.0
        %1106 = vmatpush1.msra.mxu0 0.0
        %1107 = vmatprep.subr.mxu0 0.0
        %1108 = vmatpush1.msra.mxu0 0.0
        %1109 = vmatprep.mubr.f32.mxu0 0.0
        %1110 = vmatmul.mubr.f32.gmra.mrb[0].mxu0 %v1040
        %v1111 = vpop.f32.mrb[0].mxu0
        %v1112 = vadd.f32 0.0, %v1111
        %v1113 = vpop.f32.mrb[0].mxu0
        %1114 = vdwg.mxu0
        %v1115 = vadd.f32 %v1025, %v1112
        %v1116 = vld [vmem:[%s3] sm:$0xf]
        %1118 = vset.pattern.permute.xlu0 0
        %1119 = vperm.xlu0 %1118, %v1116
        %v1120 = vpop.permute.xlu0 %1119
        %v1122 = vadd.f32 %v1115, %v1120
        %v1123 = vmax.f32 %v1122, 0.0
        %1124 = vst [vmem:[%s264] sm:$0xf] %v1123
        %s1125 = sand.u32 %s162, 1
        %s1126 = scalar_lea.sflag [#allocation4], %s1125
        %s1127 = sand.u32 %s162, 1
        %s1128 = smul.addr %s1127, 4
        %s1129 = scalar_lea.vmem [#allocation3], %s1128
        // Predicated region
        $region41: #{tpu_custom_call.1} parent=39 // pred_check
          %p1130 = pneg %p172
        $region42: #{tpu_custom_call.1} parent=39 // pred_check_branch
          %1132 = sbr.rel (%p1130) target = $region44
        $region43: #{tpu_custom_call.1} parent=39 // pred_region
          %s1134 = ssub.s32 64, 64
          %1135 = vsyncadd %s1126, %s1134
          %s1136 = smul.addr %s23, 2
          %s1137 = sadd.s32 %s24, %s1136
          %s1138 = smul.addr %s1137, 64
          %s1139 = scalar_lea.hbm %s5, %s1138
          %s1141 = sshll.u32 %s1129, 4
          %s1142 = int_to_ptr.vmem [resolvable:$true] %s1141
          %1144 = dma.vmem_to_hbm [thread:$0]  %s1142, 64, %s1139, %s1126
        $region44: #{tpu_custom_call.1} parent=39 // pred_fallthru
          _
      $region40: #{tpu_custom_call.1} parent=5 // pred_fallthru
        _
      %p1145 = scmp.le.s32.totalorder 2, %s14
      // Predicated region
      $region45: #{tpu_custom_call.1} parent=5 // pred_check
        %p1146 = pneg %p1145
      $region46: #{tpu_custom_call.1} parent=5 // pred_check_branch
        %1148 = sbr.rel (%p1146) target = $region48
      $region47: #{tpu_custom_call.1} parent=5 // pred_region
        %s1149 = ssub.s32 %s14, 2
        // Predicated region
        $region49: #{tpu_custom_call.1} parent=47 // pred_check
          %p1150 = pneg %p178
        $region50: #{tpu_custom_call.1} parent=47 // pred_check_branch
          %1152 = sbr.rel (%p1150) target = $region52
        $region51: #{tpu_custom_call.1} parent=47 // pred_region
          %s1153 = sand.u32 %s163, 1
          %s1154 = scalar_lea.sflag [#allocation4], %s1153
          %s1155 = sand.u32 %s163, 1
          %s1156 = smul.addr %s1155, 4
          %s1157 = scalar_lea.vmem [#allocation3], %s1156
          %1158 = dma.done %s1154, 64
        $region52: #{tpu_custom_call.1} parent=47 // pred_fallthru
          _
      $region48: #{tpu_custom_call.1} parent=5 // pred_fallthru
        _
    $region6: #{tpu_custom_call.1} parent=1 // loop_footer
      %s18 = sadd.s32 1, %s14
    $region7: #{tpu_custom_call.1} parent=1 // loop_footer_branch
      %13 = sbr.rel target = $region3
    $region8: #{tpu_custom_call.1} parent=1 // loop_exit
      _
    %1159 = vsyncpa [#allocation4], 1
    %s1160 = scalar_lea.sflag [#allocation4], 1
    %1161 = vsyncpa %s1160, 1

</llo_original>
